<compile_context>
chip_gen: v7x
topology: tpu7x:2x2x1
jax: 0.10.0
libtpu: 0.0.40
codegen_flags: <defaults>
</compile_context>

<pallas_src>
import functools

import numpy as np
import jax
import jax.numpy as jnp
from jax.experimental import pallas as pl
from jax.experimental.pallas import tpu as pltpu


def _default_vmem_limit():
    # 48 MiB is safe on every generation (v7x has 64 MiB physical); on
    # v5e/v6e (128 MiB) allow a larger scoped limit.
    try:
        cap = int(pltpu.get_tpu_info().vmem_capacity_bytes)
        return min((cap * 3) // 4, 100 * 1024 * 1024)
    except Exception:
        return 48 * 1024 * 1024


_VMEM_LIMIT = _default_vmem_limit()


# ---------------------------------------------------------------------------
# Tile pickers (respect the (8,128) BlockSpec constraint, prefer MXU-friendly
# 128-multiples, fall back to the full dim for small shapes)
# ---------------------------------------------------------------------------

def _tile_sub(d, pref):
    """Tile for a second-to-last (sublane) dim: full dim or mult-of-8 divisor."""
    if d <= pref:
        return d
    for t in range(pref, 0, -8):
        if d % t == 0:
            return t
    return d


def _tile_lane(d, pref):
    """Tile for a last (lane) dim: full dim or a multiple-of-128 divisor."""
    if d <= pref:
        return d
    for t in range(pref, 0, -128):
        if t % 128 == 0 and d % t == 0:
            return t
    return d


# ---------------------------------------------------------------------------
# Pallas kernels
# ---------------------------------------------------------------------------

def _dense_kernel(x_ref, w_ref, b_ref, o_ref, acc_ref, *, act):
    @pl.when(pl.program_id(2) == 0)
    def _init():
        acc_ref[...] = jnp.zeros_like(acc_ref)

    acc_ref[...] += jnp.dot(x_ref[...], w_ref[...],
                            preferred_element_type=jnp.float32)

    @pl.when(pl.program_id(2) == pl.num_programs(2) - 1)
    def _finalize():
        y = acc_ref[...] + b_ref[...].astype(jnp.float32)
        if act == "tanh":
            y = jnp.tanh(y)
        elif act == "gelu":
            # TODO(synk): HF BERT default is exact erf GELU; tanh approx kept
            # for guaranteed Mosaic lowering (small numeric drift).
            y = jax.nn.gelu(y, approximate=True)
        o_ref[...] = y.astype(o_ref.dtype)


def dense(x, w, b, act=None, out_dtype=jnp.bfloat16, min_lanes=128):
    """y = act(x @ w + b) with bf16 MXU inputs and f32 accumulation.

    Small output widths (classifier heads) are zero-padded to >=128 lanes for
    unmasked lane-dense stores and sliced back afterwards.
    """
    M, K = x.shape
    N = w.shape[1]
    n_pad = 0
    if N < min_lanes:
        n_pad = min_lanes - N
        w = jnp.pad(w, ((0, 0), (0, n_pad)))
        b = jnp.pad(b, ((0, n_pad),))
    Np = N + n_pad

    tm = _tile_sub(M, 256)
    tn = _tile_lane(Np, 512)
    tk = _tile_lane(K, 1024)
    grid = (M // tm, Np // tn, K // tk)

    out_itemsize = jnp.dtype(out_dtype).itemsize
    cost = pl.CostEstimate(
        flops=2 * M * Np * K,
        transcendentals=(M * Np) if act else 0,
        bytes_accessed=int(M * K * 2 + K * Np * 2 + M * Np * out_itemsize
                           + Np * 4),
    )

    out = pl.pallas_call(
        functools.partial(_dense_kernel, act=act),
        out_shape=jax.ShapeDtypeStruct((M, Np), out_dtype),
        grid=grid,
        in_specs=[
            pl.BlockSpec((tm, tk), lambda i, j, k: (i, k)),
            pl.BlockSpec((tk, tn), lambda i, j, k: (k, j)),
            pl.BlockSpec((1, tn), lambda i, j, k: (0, j)),
        ],
        out_specs=pl.BlockSpec((tm, tn), lambda i, j, k: (i, j)),
        scratch_shapes=[pltpu.VMEM((tm, tn), jnp.float32)],
        compiler_params=pltpu.CompilerParams(
            dimension_semantics=("parallel", "parallel", "arbitrary"),
            vmem_limit_bytes=_VMEM_LIMIT),
        cost_estimate=cost,
    )(x.astype(jnp.bfloat16), w.astype(jnp.bfloat16),
      b.astype(jnp.float32).reshape(1, Np))

    if n_pad:
        out = out[:, :N]
    return out


def _dense_add_ln_kernel(x_ref, w_ref, b_ref, r_ref, g_ref, bt_ref,
                         o_ref, acc_ref, *, eps):
    """o = LayerNorm(x @ w + b + residual) * g + beta, fused."""
    @pl.when(pl.program_id(1) == 0)
    def _init():
        acc_ref[...] = jnp.zeros_like(acc_ref)

    acc_ref[...] += jnp.dot(x_ref[...], w_ref[...],
                            preferred_element_type=jnp.float32)

    @pl.when(pl.program_id(1) == pl.num_programs(1) - 1)
    def _finalize():
        y = (acc_ref[...] + b_ref[...].astype(jnp.float32)
             + r_ref[...].astype(jnp.float32))
        mu = jnp.mean(y, axis=-1, keepdims=True)
        var = jnp.mean((y - mu) ** 2, axis=-1, keepdims=True)
        y = (y - mu) * jax.lax.rsqrt(var + eps)
        y = y * g_ref[...].astype(jnp.float32) + bt_ref[...].astype(jnp.float32)
        o_ref[...] = y.astype(o_ref.dtype)


def dense_add_ln(x, w, b, res, gamma, beta, eps=1e-12):
    """Fused matmul + bias + residual-add + layernorm. Output bf16 (M, N)."""
    # TODO(synk): assumes the full output width N fits in a single block
    # (fine for BERT hidden sizes <= ~1024; re-derive for larger models).
    M, K = x.shape
    N = w.shape[1]
    tm = _tile_sub(M, 256)
    tk = _tile_lane(K, 1024)
    grid = (M // tm, K // tk)

    cost = pl.CostEstimate(
        flops=2 * M * N * K,
        transcendentals=M,  # rsqrt per row
        bytes_accessed=int(M * K * 2 + K * N * 2 + 2 * M * N * 2 + 3 * N * 4),
    )

    return pl.pallas_call(
        functools.partial(_dense_add_ln_kernel, eps=eps),
        out_shape=jax.ShapeDtypeStruct((M, N), jnp.bfloat16),
        grid=grid,
        in_specs=[
            pl.BlockSpec((tm, tk), lambda i, k: (i, k)),
            pl.BlockSpec((tk, N), lambda i, k: (k, 0)),
            pl.BlockSpec((1, N), lambda i, k: (0, 0)),
            pl.BlockSpec((tm, N), lambda i, k: (i, 0)),
            pl.BlockSpec((1, N), lambda i, k: (0, 0)),
            pl.BlockSpec((1, N), lambda i, k: (0, 0)),
        ],
        out_specs=pl.BlockSpec((tm, N), lambda i, k: (i, 0)),
        scratch_shapes=[pltpu.VMEM((tm, N), jnp.float32)],
        compiler_params=pltpu.CompilerParams(
            dimension_semantics=("parallel", "arbitrary"),
            vmem_limit_bytes=_VMEM_LIMIT),
        cost_estimate=cost,
    )(x.astype(jnp.bfloat16), w.astype(jnp.bfloat16),
      b.astype(jnp.float32).reshape(1, N),
      res.astype(jnp.bfloat16),
      gamma.astype(jnp.float32).reshape(1, N),
      beta.astype(jnp.float32).reshape(1, N))


def _layernorm_kernel(x_ref, g_ref, b_ref, o_ref, *, eps):
    x = x_ref[...].astype(jnp.float32)
    mu = jnp.mean(x, axis=-1, keepdims=True)
    var = jnp.mean((x - mu) ** 2, axis=-1, keepdims=True)
    y = (x - mu) * jax.lax.rsqrt(var + eps)
    y = y * g_ref[...].astype(jnp.float32) + b_ref[...].astype(jnp.float32)
    o_ref[...] = y.astype(o_ref.dtype)


def layernorm(x, gamma, beta, eps=1e-12, out_dtype=jnp.bfloat16):
    M, H = x.shape
    tm = _tile_sub(M, 512)
    grid = (M // tm,)
    return pl.pallas_call(
        functools.partial(_layernorm_kernel, eps=eps),
        out_shape=jax.ShapeDtypeStruct((M, H), out_dtype),
        grid=grid,
        in_specs=[
            pl.BlockSpec((tm, H), lambda i: (i, 0)),
            pl.BlockSpec((1, H), lambda i: (0, 0)),
            pl.BlockSpec((1, H), lambda i: (0, 0)),
        ],
        out_specs=pl.BlockSpec((tm, H), lambda i: (i, 0)),
        compiler_params=pltpu.CompilerParams(
            dimension_semantics=("parallel",),
            vmem_limit_bytes=_VMEM_LIMIT),
    )(x, gamma.astype(jnp.float32).reshape(1, H),
      beta.astype(jnp.float32).reshape(1, H))


def _attention_kernel(q_ref, kt_ref, v_ref, m_ref, o_ref):
    """One (batch, head) grid point: softmax(Q K^T + mask) V on the MXU.

    The 1/sqrt(dh) scale is already folded into the Q projection weights.
    K arrives pre-transposed as (dh, S) so no in-kernel XLU transpose.
    """
    mask = m_ref[0].astype(jnp.float32)                       # (1, S) additive
    q = q_ref[0, 0]                                           # (S, dh) bf16
    kt = kt_ref[0, 0]                                         # (dh, S) bf16
    v = v_ref[0, 0]                                           # (S, dh) bf16
    s = jnp.dot(q, kt, preferred_element_type=jnp.float32) + mask   # (S, S)
    s = s - jnp.max(s, axis=-1, keepdims=True)
    p = jnp.exp(s)
    p = p * pl.reciprocal(jnp.sum(p, axis=-1, keepdims=True), approx=True)
    ctx = jnp.dot(p.astype(v.dtype), v,
                  preferred_element_type=jnp.float32)         # (S, dh) f32
    o_ref[0, 0] = ctx.astype(o_ref.dtype)
    # TODO(synk): for S >= 384 tile over the query dim so the (S,S) f32 score
    # block stays in vregs instead of spilling to VMEM.


def attention(qkv, mask_add, num_heads, hidden):
    """qkv: (B, S, 3H) packed bf16; mask_add: (B, 1, S) f32 -> (B, S, H) bf16."""
    B, S, _ = qkv.shape
    dh = hidden // num_heads
    qkv = qkv.reshape(B, S, 3, num_heads, dh)
    q = jnp.transpose(qkv[:, :, 0], (0, 2, 1, 3))             # (B, nH, S, dh)
    kt = jnp.transpose(qkv[:, :, 1], (0, 2, 3, 1))            # (B, nH, dh, S)
    v = jnp.transpose(qkv[:, :, 2], (0, 2, 1, 3))             # (B, nH, S, dh)

    ctx = pl.pallas_call(
        _attention_kernel,
        out_shape=jax.ShapeDtypeStruct((B, num_heads, S, dh), jnp.bfloat16),
        grid=(B, num_heads),
        in_specs=[
            pl.BlockSpec((1, 1, S, dh), lambda b, h: (b, h, 0, 0)),
            pl.BlockSpec((1, 1, dh, S), lambda b, h: (b, h, 0, 0)),
            pl.BlockSpec((1, 1, S, dh), lambda b, h: (b, h, 0, 0)),
            pl.BlockSpec((1, 1, S), lambda b, h: (b, 0, 0)),
        ],
        out_specs=pl.BlockSpec((1, 1, S, dh), lambda b, h: (b, h, 0, 0)),
        compiler_params=pltpu.CompilerParams(
            dimension_semantics=("parallel", "parallel"),
            vmem_limit_bytes=_VMEM_LIMIT),
    )(q, kt, v, mask_add)

    return jnp.transpose(ctx, (0, 2, 1, 3)).reshape(B, S, hidden)


def _merge_kernel(a_ref, h_ref, o_ref):
    # whole-word "avg" merge: rows of `a` hold 1/n_subtokens over each word span
    o_ref[0] = jnp.dot(a_ref[0], h_ref[0],
                       preferred_element_type=jnp.float32).astype(o_ref.dtype)


def word_merge(avg_matrix, h):
    """bf16 MXU matmul (f32 accumulate): merged[b] = A[b] @ h[b]."""
    B, W, S = avg_matrix.shape
    H = h.shape[-1]
    return pl.pallas_call(
        _merge_kernel,
        out_shape=jax.ShapeDtypeStruct((B, W, H), jnp.bfloat16),
        grid=(B,),
        in_specs=[
            pl.BlockSpec((1, W, S), lambda b: (b, 0, 0)),
            pl.BlockSpec((1, S, H), lambda b: (b, 0, 0)),
        ],
        out_specs=pl.BlockSpec((1, W, H), lambda b: (b, 0, 0)),
        compiler_params=pltpu.CompilerParams(
            dimension_semantics=("parallel",),
            vmem_limit_bytes=_VMEM_LIMIT),
    )(avg_matrix.astype(jnp.bfloat16), h.astype(jnp.bfloat16))


# ---------------------------------------------------------------------------
# Model (glue in plain JAX, compute in the kernels above)
# ---------------------------------------------------------------------------

def bert_layer(h, mask_add, p, num_heads):
    B, S, H = h.shape
    x = h.reshape(B * S, H)                                    # bf16
    qkv = dense(x, p["w_qkv"], p["b_qkv"])                     # (B*S, 3H)
    ctx = attention(qkv.reshape(B, S, 3 * H), mask_add, num_heads, H)
    # attention output projection + residual + LN1, fused
    h1 = dense_add_ln(ctx.reshape(B * S, H), p["wo"], p["bo"],
                      x, p["ln1_g"], p["ln1_b"])
    ff = dense(h1, p["wi"], p["bi"], act="gelu")               # FFN up + GELU
    # FFN down + residual + LN2, fused
    h2 = dense_add_ln(ff, p["wf"], p["bf"], h1, p["ln2_g"], p["ln2_b"])
    return h2.reshape(B, S, H)


def whole_word_bert_forward(params, input_ids, attention_mask, token_type_ids,
                            avg_matrix, sa_targets=None, lid_targets=None):
    B, S = input_ids.shape
    H = params["word_emb"].shape[1]
    nH = params["num_heads"]

    # embeddings (gather glue, bf16) + layernorm kernel (f32 stats inside)
    emb = (params["word_emb"][input_ids]
           + params["pos_emb"][None, :S, :]
           + params["type_emb"][token_type_ids]).astype(jnp.bfloat16)
    h = layernorm(emb.reshape(B * S, H),
                  params["emb_ln_g"], params["emb_ln_b"]).reshape(B, S, H)

    # BERT-style additive padding mask
    mask_add = ((1.0 - attention_mask.astype(jnp.float32)) * -10000.0)[:, None, :]
    for lp in params["layers"]:
        h = bert_layer(h, mask_add, lp, nH)

    # TODO(synk): dropout layers (p=0.25) are identity (deterministic eval).

    # sentence-classification head (BERT pooler -> classifier)
    pooled = dense(h[:, 0, :], params["pool_w"], params["pool_b"], act="tanh")
    sa_logits = dense(pooled, params["cls_w"], params["cls_b"],
                      out_dtype=jnp.float32)

    # whole-word merged encodings -> LID tagging linear
    merged = word_merge(avg_matrix, h)                         # (B, W, H) bf16
    W = merged.shape[1]
    lid_logits = dense(merged.reshape(B * W, H),
                       params["lid_w"], params["lid_b"],
                       out_dtype=jnp.float32).reshape(B, W, -1)

    out = {"sa_logits": sa_logits, "lid_logits": lid_logits, "loss": 0.0}

    if sa_targets is not None:
        logp = jax.nn.log_softmax(sa_logits, axis=-1)
        sa_loss = -jnp.mean(logp[jnp.arange(B), sa_targets])
        out["sa_loss"] = sa_loss
        out["loss"] = out["loss"] + sa_loss

    if lid_targets is not None:
        flat_logits = lid_logits.reshape(-1, lid_logits.shape[-1])
        flat_t = lid_targets.reshape(-1)
        valid = flat_t != -1                                   # ignore_index = -1
        safe_t = jnp.where(valid, flat_t, 0)
        logp = jax.nn.log_softmax(flat_logits, axis=-1)
        nll = -logp[jnp.arange(flat_t.shape[0]), safe_t]
        denom = jnp.maximum(jnp.sum(valid), 1)                 # guard /0
        lid_loss = jnp.sum(jnp.where(valid, nll, 0.0)) / denom
        out["lid_loss"] = lid_loss
        out["loss"] = out["loss"] + lid_loss

    return out


# ---------------------------------------------------------------------------
# Parameter init + one-time kernel prep (bf16 weights, folded softmax scale)
# ---------------------------------------------------------------------------

def init_params(key, *, vocab, max_pos, hidden, num_heads, inter, num_layers,
                sent_out, lang_out):
    ks = iter(jax.random.split(key, 256))

    def nrm(shape, scale=0.02):
        return (scale * jax.random.normal(next(ks), shape)).astype(jnp.float32)

    def zeros(n):
        return jnp.zeros((n,), jnp.float32)

    def ones(n):
        return jnp.ones((n,), jnp.float32)

    params = {
        "num_heads": num_heads,
        "word_emb": nrm((vocab, hidden)),
        "pos_emb": nrm((max_pos, hidden)),
        "type_emb": nrm((2, hidden)),
        "emb_ln_g": ones(hidden), "emb_ln_b": zeros(hidden),
        "layers": [],
        "pool_w": nrm((hidden, hidden)), "pool_b": zeros(hidden),
        "cls_w": nrm((hidden, sent_out)), "cls_b": zeros(sent_out),
        "lid_w": nrm((hidden, lang_out)), "lid_b": zeros(lang_out),
    }
    for _ in range(num_layers):
        params["layers"].append({
            # fused QKV projection: equivalent to concat(wq, wk, wv) on dim 1
            "w_qkv": nrm((hidden, 3 * hidden)), "b_qkv": zeros(3 * hidden),
            "wo": nrm((hidden, hidden)), "bo": zeros(hidden),
            "ln1_g": ones(hidden), "ln1_b": zeros(hidden),
            "wi": nrm((hidden, inter)), "bi": zeros(inter),
            "wf": nrm((inter, hidden)), "bf": zeros(hidden),
            "ln2_g": ones(hidden), "ln2_b": zeros(hidden),
        })
    return params


def prepare_params(params):
    """One-time prep: pre-cast weights/embeddings to bf16 (removes per-forward
    f32->bf16 HBM passes) and fold the 1/sqrt(dh) softmax scale into the Q
    columns of the fused QKV projection."""
    H = params["pool_w"].shape[0]
    nH = params["num_heads"]
    dh = H // nH
    scale = 1.0 / float(np.sqrt(dh))

    def bf(x):
        return x.astype(jnp.bfloat16)

    p = dict(params)
    for k in ("word_emb", "pos_emb", "type_emb", "pool_w", "cls_w", "lid_w"):
        p[k] = bf(params[k])

    layers = []
    for lp in params["layers"]:
        lp = dict(lp)
        w_qkv = lp["w_qkv"].at[:, :H].multiply(scale)   # fold scale into Q
        b_qkv = lp["b_qkv"].at[:H].multiply(scale)
        lp["w_qkv"] = bf(w_qkv)
        lp["b_qkv"] = b_qkv
        for k in ("wo", "wi", "wf"):
            lp[k] = bf(lp[k])
        layers.append(lp)
    p["layers"] = layers
    return p


# ---------------------------------------------------------------------------
# Driver
# ---------------------------------------------------------------------------

if __name__ == "__main__":
    B, S, H, nH, I, L = 2, 16, 32, 2, 64, 2
    V, MAXPOS = 50, 64
    SENT_OUT, LANG_OUT = 3, 5

    params = init_params(jax.random.PRNGKey(0), vocab=V, max_pos=MAXPOS,
                         hidden=H, num_heads=nH, inter=I, num_layers=L,
                         sent_out=SENT_OUT, lang_out=LANG_OUT)
    params = prepare_params(params)

    # Synthetic tokenizer output (the tokenizer itself is string code, not a
    # kernel): per-word sub-token splits, padded [CLS] ... [SEP] sequences.
    batch_splits = [[2, 1, 3, 2], [1, 2, 2]]
    seq_lens = [sum(sp) + 2 for sp in batch_splits]            # +2 for CLS/SEP
    W = max(len(sp) for sp in batch_splits)

    rng = np.random.default_rng(0)
    ids_np = np.zeros((B, S), dtype=np.int32)
    mask_np = np.zeros((B, S), dtype=np.int32)
    for b in range(B):
        lb = seq_lens[b]
        ids_np[b, :lb] = rng.integers(3, V, size=lb)
        ids_np[b, 0] = 1                                       # [CLS]
        ids_np[b, lb - 1] = 2                                  # [SEP]
        mask_np[b, :lb] = 1

    # whole-word averaging matrix: merged[b] = A[b] @ hidden[b]
    A = np.zeros((B, W, S), dtype=np.float32)
    for b, splits in enumerate(batch_splits):
        off = 1                                                # skip [CLS]
        for w, n in enumerate(splits):
            A[b, w, off:off + n] = 1.0 / n
            off += n

    input_ids = jnp.asarray(ids_np)
    attention_mask = jnp.asarray(mask_np)
    token_type_ids = jnp.zeros((B, S), dtype=jnp.int32)
    avg_matrix = jnp.asarray(A)
    sa_targets = jnp.asarray([1, 0], dtype=jnp.int32)
    lid_np = np.full((B, W), -1, dtype=np.int32)
    lid_np[0, :4] = [0, 1, 2, 3]
    lid_np[1, :3] = [1, 0, 2]
    lid_targets = jnp.asarray(lid_np)

    out = whole_word_bert_forward(params, input_ids, attention_mask,
                                  token_type_ids, avg_matrix,
                                  sa_targets=sa_targets,
                                  lid_targets=lid_targets)
    jax.block_until_ready((out["sa_logits"], out["lid_logits"], out["loss"]))
    assert out["sa_logits"].shape == (B, SENT_OUT)
    assert out["lid_logits"].shape == (B, W, LANG_OUT)
    assert bool(jnp.isfinite(out["loss"]))
    print("KERNEL_OK")
</pallas_src>

<mosaic_0001>
module attributes {stable_mosaic.version = 11 : i64} {
  func.func @_layernorm_kernel(%arg0: i32, %arg1: memref<32x32xbf16, #tpu.memory_space<vmem>>, %arg2: memref<1x32xf32, #tpu.memory_space<vmem>>, %arg3: memref<1x32xf32, #tpu.memory_space<vmem>>, %arg4: memref<32x32xbf16, #tpu.memory_space<vmem>>) attributes {dimension_semantics = [#tpu.dimension_semantics<parallel>], iteration_bounds = array<i64: 1>, scalar_prefetch = 0 : i64, scratch_operands = 0 : i64, tpu.core_type = #tpu.core_type<tc>, window_params = [{transform_indices = @transform_0, window_bounds = array<i64: 32, 32>}, {pipeline_mode = #tpu.pipeline_mode<synchronous>, transform_indices = @transform_1, window_bounds = array<i64: 1, 32>}, {pipeline_mode = #tpu.pipeline_mode<synchronous>, transform_indices = @transform_2, window_bounds = array<i64: 1, 32>}, {transform_indices = @transform_3, window_bounds = array<i64: 32, 32>}]} {
    %c0 = arith.constant 0 : index
    %c0_0 = arith.constant 0 : index
    %0 = vector.load %arg1[%c0, %c0_0] : memref<32x32xbf16, #tpu.memory_space<vmem>>, vector<32x32xbf16>
    %1 = arith.extf %0 : vector<32x32xbf16> to vector<32x32xf32>
    %cst = arith.constant dense<0.000000e+00> : vector<32xf32>
    %2 = vector.multi_reduction <add>, %1, %cst [1] : vector<32x32xf32> to vector<32xf32>
    %3 = vector.shape_cast %2 : vector<32xf32> to vector<32x1xf32>
    %cst_1 = arith.constant 3.200000e+01 : f32
    %4 = vector.broadcast %cst_1 : f32 to vector<32x1xf32>
    %5 = arith.divf %3, %4 : vector<32x1xf32>
    %6 = vector.broadcast %5 : vector<32x1xf32> to vector<32x32xf32>
    %7 = arith.subf %1, %6 : vector<32x32xf32>
    %8 = arith.mulf %7, %7 : vector<32x32xf32>
    %cst_2 = arith.constant dense<0.000000e+00> : vector<32xf32>
    %9 = vector.multi_reduction <add>, %8, %cst_2 [1] : vector<32x32xf32> to vector<32xf32>
    %10 = vector.shape_cast %9 : vector<32xf32> to vector<32x1xf32>
    %cst_3 = arith.constant 3.200000e+01 : f32
    %11 = vector.broadcast %cst_3 : f32 to vector<32x1xf32>
    %12 = arith.divf %10, %11 : vector<32x1xf32>
    %13 = vector.broadcast %5 : vector<32x1xf32> to vector<32x32xf32>
    %14 = arith.subf %1, %13 : vector<32x32xf32>
    %cst_4 = arith.constant 9.99999996E-13 : f32
    %15 = vector.broadcast %cst_4 : f32 to vector<32x1xf32>
    %16 = arith.addf %12, %15 : vector<32x1xf32>
    %17 = math.rsqrt %16 : vector<32x1xf32>
    %18 = vector.broadcast %17 : vector<32x1xf32> to vector<32x32xf32>
    %19 = arith.mulf %14, %18 : vector<32x32xf32>
    %c0_5 = arith.constant 0 : index
    %c0_6 = arith.constant 0 : index
    %20 = vector.load %arg2[%c0_5, %c0_6] : memref<1x32xf32, #tpu.memory_space<vmem>>, vector<1x32xf32>
    %21 = vector.broadcast %20 : vector<1x32xf32> to vector<32x32xf32>
    %22 = arith.mulf %19, %21 : vector<32x32xf32>
    %c0_7 = arith.constant 0 : index
    %c0_8 = arith.constant 0 : index
    %23 = vector.load %arg3[%c0_7, %c0_8] : memref<1x32xf32, #tpu.memory_space<vmem>>, vector<1x32xf32>
    %24 = vector.broadcast %23 : vector<1x32xf32> to vector<32x32xf32>
    %25 = arith.addf %22, %24 : vector<32x32xf32>
    %26 = arith.truncf %25 : vector<32x32xf32> to vector<32x32xbf16>
    %c0_9 = arith.constant 0 : index
    %c0_10 = arith.constant 0 : index
    %27 = vector.load %arg4[%c0_9, %c0_10] : memref<32x32xbf16, #tpu.memory_space<vmem>>, vector<32x32xbf16>
    tpu.vector_store %arg4[%c0_9, %c0_10], %26 {strides = array<i32>} : memref<32x32xbf16, #tpu.memory_space<vmem>>, vector<32x32xbf16>,
    return
  }
  func.func @transform_0(%arg0: i32) -> (i32, i32) {
    %c0_i32 = arith.constant 0 : i32
    %c0_i32_0 = arith.constant 0 : i32
    return %arg0, %c0_i32 : i32, i32
  }
  func.func @transform_1(%arg0: i32) -> (i32, i32) {
    %c0_i32 = arith.constant 0 : i32
    %c0_i32_0 = arith.constant 0 : i32
    %c0_i32_1 = arith.constant 0 : i32
    return %c0_i32, %c0_i32_0 : i32, i32
  }
  func.func @transform_2(%arg0: i32) -> (i32, i32) {
    %c0_i32 = arith.constant 0 : i32
    %c0_i32_0 = arith.constant 0 : i32
    %c0_i32_1 = arith.constant 0 : i32
    return %c0_i32, %c0_i32_0 : i32, i32
  }
  func.func @transform_3(%arg0: i32) -> (i32, i32) {
    %c0_i32 = arith.constant 0 : i32
    %c0_i32_0 = arith.constant 0 : i32
    return %arg0, %c0_i32 : i32, i32
  }
}

</mosaic_0001>

<llo_original>
// kernel: tpu_custom_call.1
$region0: #{tpu_custom_call.1}
  #allocation0 [shape = 'u32[]', space=smem, size = 0x4, offset = 0x4, fixed_abs, tag = 'smem constant byte address 0x4 - core index']
  #allocation1 [shape = 'u32[144,128]{1,0:T(1,128)}', space=vmem, size = 0x12000, scoped, tag = 'internal scratch']
  %s0 = inlined_call_operand.hbm [shape: bf16[32,32], index: 0, kind: input, shape index: {}]
  %s1 = inlined_call_operand.vmem [shape: f32[1,32], index: 1, kind: input, shape index: {}]
  %s2 = inlined_call_operand.vmem [shape: f32[1,32], index: 2, kind: input, shape index: {}]
  %s3 = inlined_call_operand.hbm [shape: bf16[32,32], index: 3, kind: output, shape index: {}]
  %s4 = sld [smem:[#allocation0]]
  $region26: #{tpu_custom_call.1} parent=0
    _
  %s6 = ssub.s32 1, %s4
  %s7 = scalar_select 0, %s6, %s4
  $region1: #{tpu_custom_call.1} parent=0
    #allocation2 [shape = 'u8[8192]{0}', space=vmem, size = 0x2000, scoped, tag = 'input window, operand 0, single buffered']
    #allocation3 [shape = 's32[1]{0}', space=sflag, size = 0x4, scoped, tag = 'scoped memory for tpu_custom_call.1']
    #allocation4 [shape = 's32[1]{0}', space=sflag, size = 0x4, scoped, tag = 'scoped memory for tpu_custom_call.1']
    #allocation5 [shape = 'u8[8192]{0}', space=vmem, size = 0x2000, scoped, tag = 'output window, operand 0, single buffered']
    %8 = vsyncpa [#allocation3], 0
    %9 = vsyncpa [#allocation4], 0
    // Predicated region
    $region2: #{tpu_custom_call.1} parent=1 // pred_check
      _
    $region3: #{tpu_custom_call.1} parent=1 // pred_check_branch
      %11 = sbr.rel (0) target = $region5
    $region4: #{tpu_custom_call.1} parent=1 // pred_region
      %s13 = ssub.s32 256, 256
      %14 = vsyncadd [#allocation3], %s13
      %s15 = sshll.u32 [#allocation2], 4
      %s16 = int_to_ptr.vmem [resolvable:$true] %s15
      %21 = dma.hbm_to_vmem [thread:$0]  %s0, 256, %s16, [#allocation3], 64, 64, 4
    $region5: #{tpu_custom_call.1} parent=1 // pred_fallthru
      _
    // Predicated region
    $region6: #{tpu_custom_call.1} parent=1 // pred_check
      _
    $region7: #{tpu_custom_call.1} parent=1 // pred_check_branch
      %23 = sbr.rel (0) target = $region9
    $region8: #{tpu_custom_call.1} parent=1 // pred_region
      _
    $region9: #{tpu_custom_call.1} parent=1 // pred_fallthru
      _
    // Predicated region
    $region10: #{tpu_custom_call.1} parent=1 // pred_check
      _
    $region11: #{tpu_custom_call.1} parent=1 // pred_check_branch
      %25 = sbr.rel (0) target = $region13
    $region12: #{tpu_custom_call.1} parent=1 // pred_region
      _
    $region13: #{tpu_custom_call.1} parent=1 // pred_fallthru
      _
    // Predicated region
    $region14: #{tpu_custom_call.1} parent=1 // pred_check
      _
    $region15: #{tpu_custom_call.1} parent=1 // pred_check_branch
      %27 = sbr.rel (0) target = $region17
    $region16: #{tpu_custom_call.1} parent=1 // pred_region
      %28 = dma.done [#allocation3], 256
    $region17: #{tpu_custom_call.1} parent=1 // pred_fallthru
      _
    %v29 = vld [vmem:[#allocation2] sm:$0xf]
    %v30 = vld [vmem:[#allocation2 + $0x4] sm:$0xf]
    %v31 = vld [vmem:[#allocation2 + $0x8] sm:$0xf]
    %v32 = vld [vmem:[#allocation2 + $0xc] sm:$0xf]
    %v33 = vunpack.c.l.bf16 %v29
    %v34 = vunpack.c.l.bf16 %v30
    %v35 = vunpack.c.l.bf16 %v31
    %v36 = vunpack.c.l.bf16 %v32
    %vm37 = vcmask 261120
    %v38 = vsel %vm37, %v33, 0.0
    %39 = vadd.xlane.f32.xlu0 %v38
    %v40 = vpop.xlane.xlu0 %39
    %v41 = vsel %vm37, %v34, 0.0
    %42 = vadd.xlane.f32.xlu0 %v41
    %v43 = vpop.xlane.xlu0 %42
    %v44 = vsel %vm37, %v35, 0.0
    %45 = vadd.xlane.f32.xlu0 %v44
    %v46 = vpop.xlane.xlu0 %45
    %v47 = vsel %vm37, %v36, 0.0
    %48 = vadd.xlane.f32.xlu0 %v47
    %v49 = vpop.xlane.xlu0 %48
    %v50 = vrcp.pop 32.0
    %v51 = vmul.f32 %v40, %v50
    %v52 = vmul.f32 %v43, %v50
    %v53 = vmul.f32 %v46, %v50
    %v54 = vmul.f32 %v49, %v50
    %v55 = vsub.f32 %v33, %v51
    %v56 = vsub.f32 %v34, %v52
    %v57 = vsub.f32 %v35, %v53
    %v58 = vsub.f32 %v36, %v54
    %v59 = vmul.f32 %v55, %v55
    %v60 = vmul.f32 %v56, %v56
    %v61 = vmul.f32 %v57, %v57
    %v62 = vmul.f32 %v58, %v58
    %v63 = vsel %vm37, %v59, 0.0
    %64 = vadd.xlane.f32.xlu0 %v63
    %v65 = vpop.xlane.xlu0 %64
    %v66 = vsel %vm37, %v60, 0.0
    %67 = vadd.xlane.f32.xlu0 %v66
    %v68 = vpop.xlane.xlu0 %67
    %v69 = vsel %vm37, %v61, 0.0
    %70 = vadd.xlane.f32.xlu0 %v69
    %v71 = vpop.xlane.xlu0 %70
    %v72 = vsel %vm37, %v62, 0.0
    %73 = vadd.xlane.f32.xlu0 %v72
    %v74 = vpop.xlane.xlu0 %73
    %v75 = vmul.f32 %v65, %v50
    %v76 = vmul.f32 %v68, %v50
    %v77 = vmul.f32 %v71, %v50
    %v78 = vmul.f32 %v74, %v50
    %v79 = vadd.f32 %v75, 1e-12
    %v80 = vadd.f32 %v76, 1e-12
    %v81 = vadd.f32 %v77, 1e-12
    %v82 = vadd.f32 %v78, 1e-12
    %v83 = vrsqrt.pop %v79
    %v84 = vrsqrt.pop %v80
    %v85 = vrsqrt.pop %v81
    %v86 = vrsqrt.pop %v82
    %v87 = vmul.f32 %v55, %v83
    %v88 = vmul.f32 %v56, %v84
    %v89 = vmul.f32 %v57, %v85
    %v90 = vmul.f32 %v58, %v86
    %v91 = vld [vmem:[%s1] sm:$0x1]
    %v93 = vlaneseq
    %v94 = vshrl.u32 %v93, 7
    %v95 = vsub.s32 0, %v94
    %v96 = vrot.slane %v91, %v95
    %v98 = vmul.f32 %v87, %v96
    %v99 = vmul.f32 %v88, %v96
    %v100 = vmul.f32 %v89, %v96
    %v101 = vmul.f32 %v90, %v96
    %v102 = vld [vmem:[%s2] sm:$0x1]
    %v104 = vlaneseq
    %v105 = vshrl.u32 %v104, 7
    %v106 = vsub.s32 0, %v105
    %v107 = vrot.slane %v102, %v106
    %v109 = vadd.f32 %v98, %v107
    %v110 = vadd.f32 %v99, %v107
    %v111 = vadd.f32 %v100, %v107
    %v112 = vadd.f32 %v101, %v107
    %v113 = vpack.c.bf16 %v110, %v109
    %v114 = vpack.c.bf16 %v112, %v111
    %v117 = vunpack.c.l.b16 %v113
    %v118 = vunpack.c.h.b16 %v113
    %v119 = vunpack.c.l.b16 %v114
    %v120 = vunpack.c.h.b16 %v114
    %v121 = vpack.c.b16 %v117, %v117
    %v122 = vpack.c.b16 %v118, %v118
    %v123 = vpack.c.b16 %v119, %v119
    %v124 = vpack.c.b16 %v120, %v120
    %vm129 = vcmask 257024
    %130 = vst.msk [vmem:[#allocation5] sm:$0xf] %vm129, %v121
    %131 = vst.msk [vmem:[#allocation5 + $0x4] sm:$0xf] %vm129, %v122
    %132 = vst.msk [vmem:[#allocation5 + $0x8] sm:$0xf] %vm129, %v123
    %133 = vst.msk [vmem:[#allocation5 + $0xc] sm:$0xf] %vm129, %v124
    // Predicated region
    $region18: #{tpu_custom_call.1} parent=1 // pred_check
      _
    $region19: #{tpu_custom_call.1} parent=1 // pred_check_branch
      %135 = sbr.rel (0) target = $region21
    $region20: #{tpu_custom_call.1} parent=1 // pred_region
      %s137 = ssub.s32 256, 256
      %138 = vsyncadd [#allocation4], %s137
      %s139 = sshll.u32 [#allocation5], 4
      %s140 = int_to_ptr.vmem [resolvable:$true] %s139
      %145 = dma.vmem_to_hbm [thread:$0]  %s140, 256, %s3, [#allocation4], 64, 64, 4
    $region21: #{tpu_custom_call.1} parent=1 // pred_fallthru
      _
    // Predicated region
    $region22: #{tpu_custom_call.1} parent=1 // pred_check
      _
    $region23: #{tpu_custom_call.1} parent=1 // pred_check_branch
      %147 = sbr.rel (0) target = $region25
    $region24: #{tpu_custom_call.1} parent=1 // pred_region
      %148 = dma.done [#allocation4], 256
    $region25: #{tpu_custom_call.1} parent=1 // pred_fallthru
      _
    %149 = vsyncpa [#allocation3], 1
    %150 = vsyncpa [#allocation4], 1

</llo_original>
